<compile_context>
chip_gen: v7x
topology: tpu7x:2x2x1
jax: 0.10.0
libtpu: 0.0.40
codegen_flags: <defaults>
</compile_context>

<pallas_src>
import functools
import math

import jax
import jax.numpy as jnp
from jax import lax
from jax.experimental import pallas as pl
from jax.experimental.pallas import tpu as pltpu


def _round_up(x, m):
    return ((x + m - 1) // m) * m


def _lookahead_kernel(x_ref, halo_ref, w_ref, o_ref, *, batch, total_rows):
    """One (rows, Ft) time/feature tile of the flattened lookahead conv.

    x_ref:    (rows, Ft)  current tile; rows = flattened (time, batch)
    halo_ref: (H,    Ft)  the H rows of x immediately after this tile
    w_ref:    (taps, Ft)  transposed weight (taps = context + 1)
    o_ref:    (rows, Ft)
    """
    rows = x_ref.shape[0]
    H = halo_ref.shape[0]
    taps = w_ref.shape[0]
    it = pl.program_id(0)

    limit = total_rows - it * rows        # rows of this window still in-sequence
    interior = limit >= rows + H          # window never crosses the sequence end

    w32 = w_ref[...].astype(jnp.float32)  # hoisted cast, (taps, Ft)

    def accumulate(xw):
        # context is small & static -> unrolled tap loop over shifted windows.
        acc = xw[0:rows].astype(jnp.float32) * w32[0:1, :]
        for c in range(1, taps):
            off = c * batch
            acc = acc + xw[off:off + rows].astype(jnp.float32) * w32[c:c + 1, :]
        return acc

    @pl.when(interior)
    def _fast():
        # Steady state: tile + halo are fully inside the sequence -> no mask.
        xw = jnp.concatenate([x_ref[...], halo_ref[...]], axis=0)
        o_ref[...] = accumulate(xw).astype(o_ref.dtype)

    @pl.when(jnp.logical_not(interior))
    def _edge():
        # Rare tail tiles: zero every window row at/past the sequence end.
        # This reproduces the PyTorch zero padding AND neutralizes garbage
        # from the partial last block / clamped halo block.
        xw = jnp.concatenate([x_ref[...], halo_ref[...]], axis=0)
        row_id = lax.broadcasted_iota(jnp.int32, (rows + H, 1), 0)
        xw = jnp.where(row_id < limit, xw, jnp.zeros((), xw.dtype))
        o_ref[...] = accumulate(xw).astype(o_ref.dtype)


def lookahead(x, weight, *, time_block_rows=1024, feature_block=1024,
              vmem_limit_bytes=48 * 1024 * 1024):
    """x: (seq_len, batch, n_features); weight: (n_features, context + 1)."""
    seq_len, batch, n_features = x.shape
    taps = weight.shape[1]
    context = taps - 1
    assert context > 0 and weight.shape[0] == n_features
    assert feature_block % 128 == 0

    total_rows = seq_len * batch
    halo_rows = context * batch

    # Halo block height: halo_rows rounded up to the sublane granularity.
    sub = 16 if jnp.dtype(x.dtype).itemsize == 2 else 8
    H = _round_up(max(halo_rows, 1), sub)

    # Row tile: a multiple of H so the halo of tile `it` starts exactly at
    # halo-block index (it + 1) * (rows_blk // H).  Single-tile inputs use the
    # full extent (their halo is pure padding and is masked in-kernel).
    rows_blk = _round_up(max(time_block_rows, H), H)
    if rows_blk >= total_rows:
        rows_blk = total_rows
    n_tt = pl.cdiv(total_rows, rows_blk)

    # Feature tile: lane-dense full-F whenever it fits (or F is ragged).
    if n_features <= feature_block or n_features % feature_block != 0:
        feat_blk = n_features
    else:
        feat_blk = feature_block
    n_ft = pl.cdiv(n_features, feat_blk)

    # Copy-free relayout: flatten (time, batch) onto the sublane axis.
    x2 = x.reshape(total_rows, n_features)
    w_t = jnp.transpose(weight)             # (taps, n_features), tiny

    halo_blocks = pl.cdiv(total_rows, H)
    stride = max(rows_blk // H, 1)

    def x_map(it, jf):
        return (it, jf)

    def halo_map(it, jf):
        # H rows immediately following tile `it`; clamped for tail tiles whose
        # halo lies past the sequence end (their content is masked in-kernel).
        return (jnp.minimum((it + 1) * stride, halo_blocks - 1), jf)

    def w_map(it, jf):
        return (0, jf)

    kernel = functools.partial(_lookahead_kernel, batch=batch,
                               total_rows=total_rows)

    out2 = pl.pallas_call(
        kernel,
        out_shape=jax.ShapeDtypeStruct((total_rows, n_features), x.dtype),
        grid=(n_tt, n_ft),                  # time leading -> feeds v7x 2-TC split
        in_specs=[
            pl.BlockSpec((rows_blk, feat_blk), x_map),
            pl.BlockSpec((H, feat_blk), halo_map),
            pl.BlockSpec((taps, feat_blk), w_map),
        ],
        out_specs=pl.BlockSpec((rows_blk, feat_blk), x_map),
        compiler_params=pltpu.CompilerParams(
            dimension_semantics=("parallel", "parallel"),
            vmem_limit_bytes=vmem_limit_bytes,
        ),
    )(x2, x2, w_t)

    return out2.reshape(seq_len, batch, n_features)


def lookahead_reference(x, weight):
    """Pure-JAX reference matching the PyTorch forward exactly."""
    seq_len = x.shape[0]
    context = weight.shape[1] - 1
    pad = jnp.zeros((context,) + x.shape[1:], dtype=x.dtype)
    xp = jnp.concatenate([x, pad], axis=0)
    out = jnp.zeros(x.shape, dtype=jnp.float32)
    for c in range(context + 1):
        out = out + (xp[c:c + seq_len].astype(jnp.float32)
                     * weight[:, c].astype(jnp.float32)[None, None, :])
    return out.astype(x.dtype)


if __name__ == "__main__":
    key = jax.random.PRNGKey(0)
    k_x, k_w, k_x2, k_w2 = jax.random.split(key, 4)

    # --- Test 1: module's small shape (single tile, full-extent blocks) ---
    seq_len, batch, n_features, context = 8, 2, 32, 3
    x = jax.random.normal(k_x, (seq_len, batch, n_features), dtype=jnp.float32)
    # init_parameters(): uniform(-stdv, stdv) with stdv = 1/sqrt(context+1)
    stdv = 1.0 / math.sqrt(context + 1)
    weight = jax.random.uniform(k_w, (n_features, context + 1),
                                dtype=jnp.float32, minval=-stdv, maxval=stdv)

    out = jax.block_until_ready(jax.jit(lookahead)(x, weight))
    ref = lookahead_reference(x, weight)
    assert out.shape == (seq_len, batch, n_features)
    assert jnp.allclose(out, ref, atol=1e-5, rtol=1e-5), "mismatch (test 1)"

    # --- Test 2: multi-tile path (time/feature tiling, halo blocks, tail mask) ---
    seq_len2, batch2, n_features2, context2 = 300, 4, 256, 7
    x_b = jax.random.normal(k_x2, (seq_len2, batch2, n_features2),
                            dtype=jnp.float32)
    stdv2 = 1.0 / math.sqrt(context2 + 1)
    weight_b = jax.random.uniform(k_w2, (n_features2, context2 + 1),
                                  dtype=jnp.float32, minval=-stdv2, maxval=stdv2)
    small_tile = functools.partial(lookahead,
                                   time_block_rows=128, feature_block=128)
    out_b = jax.block_until_ready(jax.jit(small_tile)(x_b, weight_b))
    ref_b = lookahead_reference(x_b, weight_b)
    assert jnp.allclose(out_b, ref_b, atol=1e-5, rtol=1e-5), "mismatch (test 2)"

    print("KERNEL_OK")
</pallas_src>

<mosaic_0001>
module attributes {stable_mosaic.version = 11 : i64} {
  func.func @_lookahead_kernel(%arg0: i32, %arg1: i32, %arg2: memref<16x32xf32, #tpu.memory_space<vmem>>, %arg3: memref<8x32xf32, #tpu.memory_space<vmem>>, %arg4: memref<4x32xf32, #tpu.memory_space<vmem>>, %arg5: memref<16x32xf32, #tpu.memory_space<vmem>>) attributes {dimension_semantics = [#tpu.dimension_semantics<parallel>, #tpu.dimension_semantics<parallel>], iteration_bounds = array<i64: 1, 1>, scalar_prefetch = 0 : i64, scratch_operands = 0 : i64, tpu.core_type = #tpu.core_type<tc>, window_params = [{transform_indices = @transform_0, window_bounds = array<i64: 16, 32>}, {transform_indices = @transform_1, window_bounds = array<i64: 8, 32>}, {transform_indices = @transform_2, window_bounds = array<i64: 4, 32>}, {transform_indices = @transform_3, window_bounds = array<i64: 16, 32>}]} {
    %c16_i32 = arith.constant 16 : i32
    %0 = arith.muli %arg0, %c16_i32 : i32
    %c16_i32_0 = arith.constant 16 : i32
    %1 = arith.subi %c16_i32_0, %0 : i32
    %c24_i32 = arith.constant 24 : i32
    %2 = arith.cmpi sge, %1, %c24_i32 : i32
    %c0 = arith.constant 0 : index
    %c0_1 = arith.constant 0 : index
    %3 = vector.load %arg4[%c0, %c0_1] : memref<4x32xf32, #tpu.memory_space<vmem>>, vector<4x32xf32>
    %4 = arith.extui %2 : i1 to i32
    %c0_i32 = arith.constant 0 : i32
    %5 = arith.cmpi ne, %4, %c0_i32 : i32
    scf.if %5 {
      %c0_3 = arith.constant 0 : index
      %c0_4 = arith.constant 0 : index
      %9 = vector.load %arg2[%c0_3, %c0_4] : memref<16x32xf32, #tpu.memory_space<vmem>>, vector<16x32xf32>
      %c0_5 = arith.constant 0 : index
      %c0_6 = arith.constant 0 : index
      %10 = vector.load %arg3[%c0_5, %c0_6] : memref<8x32xf32, #tpu.memory_space<vmem>>, vector<8x32xf32>
      %11 = tpu.concatenate %9, %10 in 0 : vector<16x32xf32>, vector<8x32xf32> -> vector<24x32xf32>
      %12 = vector.extract_strided_slice %11 {offsets = [0, 0], sizes = [16, 32], strides = [1, 1]} : vector<24x32xf32> to vector<16x32xf32>
      %13 = vector.extract_strided_slice %3 {offsets = [0, 0], sizes = [1, 32], strides = [1, 1]} : vector<4x32xf32> to vector<1x32xf32>
      %14 = vector.broadcast %13 : vector<1x32xf32> to vector<16x32xf32>
      %15 = arith.mulf %12, %14 : vector<16x32xf32>
      %16 = vector.extract_strided_slice %11 {offsets = [2, 0], sizes = [16, 32], strides = [1, 1]} : vector<24x32xf32> to vector<16x32xf32>
      %17 = vector.extract_strided_slice %3 {offsets = [1, 0], sizes = [1, 32], strides = [1, 1]} : vector<4x32xf32> to vector<1x32xf32>
      %18 = vector.broadcast %17 : vector<1x32xf32> to vector<16x32xf32>
      %19 = arith.mulf %16, %18 : vector<16x32xf32>
      %20 = arith.addf %15, %19 : vector<16x32xf32>
      %21 = vector.extract_strided_slice %11 {offsets = [4, 0], sizes = [16, 32], strides = [1, 1]} : vector<24x32xf32> to vector<16x32xf32>
      %22 = vector.extract_strided_slice %3 {offsets = [2, 0], sizes = [1, 32], strides = [1, 1]} : vector<4x32xf32> to vector<1x32xf32>
      %23 = vector.broadcast %22 : vector<1x32xf32> to vector<16x32xf32>
      %24 = arith.mulf %21, %23 : vector<16x32xf32>
      %25 = arith.addf %20, %24 : vector<16x32xf32>
      %26 = vector.extract_strided_slice %11 {offsets = [6, 0], sizes = [16, 32], strides = [1, 1]} : vector<24x32xf32> to vector<16x32xf32>
      %27 = vector.extract_strided_slice %3 {offsets = [3, 0], sizes = [1, 32], strides = [1, 1]} : vector<4x32xf32> to vector<1x32xf32>
      %28 = vector.broadcast %27 : vector<1x32xf32> to vector<16x32xf32>
      %29 = arith.mulf %26, %28 : vector<16x32xf32>
      %30 = arith.addf %25, %29 : vector<16x32xf32>
      %c0_7 = arith.constant 0 : index
      %c0_8 = arith.constant 0 : index
      %31 = vector.load %arg5[%c0_7, %c0_8] : memref<16x32xf32, #tpu.memory_space<vmem>>, vector<16x32xf32>
      tpu.vector_store %arg5[%c0_7, %c0_8], %30 {strides = array<i32>} : memref<16x32xf32, #tpu.memory_space<vmem>>, vector<16x32xf32>,
    } else {
    }
    %true = arith.constant true
    %6 = arith.xori %2, %true : i1
    %7 = arith.extui %6 : i1 to i32
    %c0_i32_2 = arith.constant 0 : i32
    %8 = arith.cmpi ne, %7, %c0_i32_2 : i32
    scf.if %8 {
      %c0_3 = arith.constant 0 : index
      %c0_4 = arith.constant 0 : index
      %9 = vector.load %arg2[%c0_3, %c0_4] : memref<16x32xf32, #tpu.memory_space<vmem>>, vector<16x32xf32>
      %c0_5 = arith.constant 0 : index
      %c0_6 = arith.constant 0 : index
      %10 = vector.load %arg3[%c0_5, %c0_6] : memref<8x32xf32, #tpu.memory_space<vmem>>, vector<8x32xf32>
      %11 = tpu.concatenate %9, %10 in 0 : vector<16x32xf32>, vector<8x32xf32> -> vector<24x32xf32>
      %12 = tpu.iota {dimensions = array<i32: 0>} : vector<24x1xi32>
      %13 = vector.broadcast %1 : i32 to vector<24x1xi32>
      %14 = arith.cmpi slt, %12, %13 : vector<24x1xi32>
      %cst = arith.constant 0.000000e+00 : f32
      %15 = vector.shape_cast %14 : vector<24x1xi1> to vector<24x1xi1>
      %16 = vector.broadcast %15 : vector<24x1xi1> to vector<24x32xi1>
      %17 = vector.broadcast %cst : f32 to vector<24x32xf32>
      %18 = arith.select %16, %11, %17 : vector<24x32xi1>, vector<24x32xf32>
      %19 = vector.extract_strided_slice %18 {offsets = [0, 0], sizes = [16, 32], strides = [1, 1]} : vector<24x32xf32> to vector<16x32xf32>
      %20 = vector.extract_strided_slice %3 {offsets = [0, 0], sizes = [1, 32], strides = [1, 1]} : vector<4x32xf32> to vector<1x32xf32>
      %21 = vector.broadcast %20 : vector<1x32xf32> to vector<16x32xf32>
      %22 = arith.mulf %19, %21 : vector<16x32xf32>
      %23 = vector.extract_strided_slice %18 {offsets = [2, 0], sizes = [16, 32], strides = [1, 1]} : vector<24x32xf32> to vector<16x32xf32>
      %24 = vector.extract_strided_slice %3 {offsets = [1, 0], sizes = [1, 32], strides = [1, 1]} : vector<4x32xf32> to vector<1x32xf32>
      %25 = vector.broadcast %24 : vector<1x32xf32> to vector<16x32xf32>
      %26 = arith.mulf %23, %25 : vector<16x32xf32>
      %27 = arith.addf %22, %26 : vector<16x32xf32>
      %28 = vector.extract_strided_slice %18 {offsets = [4, 0], sizes = [16, 32], strides = [1, 1]} : vector<24x32xf32> to vector<16x32xf32>
      %29 = vector.extract_strided_slice %3 {offsets = [2, 0], sizes = [1, 32], strides = [1, 1]} : vector<4x32xf32> to vector<1x32xf32>
      %30 = vector.broadcast %29 : vector<1x32xf32> to vector<16x32xf32>
      %31 = arith.mulf %28, %30 : vector<16x32xf32>
      %32 = arith.addf %27, %31 : vector<16x32xf32>
      %33 = vector.extract_strided_slice %18 {offsets = [6, 0], sizes = [16, 32], strides = [1, 1]} : vector<24x32xf32> to vector<16x32xf32>
      %34 = vector.extract_strided_slice %3 {offsets = [3, 0], sizes = [1, 32], strides = [1, 1]} : vector<4x32xf32> to vector<1x32xf32>
      %35 = vector.broadcast %34 : vector<1x32xf32> to vector<16x32xf32>
      %36 = arith.mulf %33, %35 : vector<16x32xf32>
      %37 = arith.addf %32, %36 : vector<16x32xf32>
      %c0_7 = arith.constant 0 : index
      %c0_8 = arith.constant 0 : index
      %38 = vector.load %arg5[%c0_7, %c0_8] : memref<16x32xf32, #tpu.memory_space<vmem>>, vector<16x32xf32>
      tpu.vector_store %arg5[%c0_7, %c0_8], %37 {strides = array<i32>} : memref<16x32xf32, #tpu.memory_space<vmem>>, vector<16x32xf32>,
    } else {
    }
    return
  }
  func.func @transform_0(%arg0: i32, %arg1: i32) -> (i32, i32) {
    %c0_i32 = arith.constant 0 : i32
    return %arg0, %arg1 : i32, i32
  }
  func.func @transform_1(%arg0: i32, %arg1: i32) -> (i32, i32) {
    %c1_i32 = arith.constant 1 : i32
    %0 = arith.addi %arg0, %c1_i32 : i32
    %c2_i32 = arith.constant 2 : i32
    %1 = arith.muli %0, %c2_i32 : i32
    %c1_i32_0 = arith.constant 1 : i32
    %2 = arith.minsi %1, %c1_i32_0 : i32
    %c0_i32 = arith.constant 0 : i32
    return %2, %arg1 : i32, i32
  }
  func.func @transform_2(%arg0: i32, %arg1: i32) -> (i32, i32) {
    %c0_i32 = arith.constant 0 : i32
    %c0_i32_0 = arith.constant 0 : i32
    return %c0_i32, %arg1 : i32, i32
  }
  func.func @transform_3(%arg0: i32, %arg1: i32) -> (i32, i32) {
    %c0_i32 = arith.constant 0 : i32
    return %arg0, %arg1 : i32, i32
  }
}

</mosaic_0001>

<llo_original>
// kernel: lookahead.1
$region0: #{lookahead.1}
  #allocation0 [shape = 'u32[]', space=smem, size = 0x4, offset = 0x4, fixed_abs, tag = 'smem constant byte address 0x4 - core index']
  #allocation1 [shape = 'u32[144,128]{1,0:T(1,128)}', space=vmem, size = 0x12000, scoped, tag = 'internal scratch']
  %s0 = inlined_call_operand.hbm [shape: f32[16,32], index: 0, kind: input, shape index: {}, may-alias: {0,1}]
  %s1 = inlined_call_operand.hbm [shape: f32[16,32], index: 1, kind: input, shape index: {}, may-alias: {0,1}]
  %s2 = inlined_call_operand.vmem [shape: f32[4,32], index: 2, kind: input, shape index: {}]
  %s3 = inlined_call_operand.hbm [shape: f32[16,32], index: 3, kind: output, shape index: {}]
  %s4 = sld [smem:[#allocation0]]
  $region38: #{lookahead.1} parent=0
    _
  %s6 = ssub.s32 1, %s4
  %s7 = scalar_select 0, %s6, %s4
  $region1: #{lookahead.1} parent=0
    #allocation2 [shape = 'u8[8192]{0}', space=vmem, size = 0x2000, scoped, tag = 'input window, operand 0, single buffered']
    #allocation3 [shape = 's32[1]{0}', space=sflag, size = 0x4, scoped, tag = 'scoped memory for lookahead.1']
    #allocation4 [shape = 's32[1]{0}', space=sflag, size = 0x4, scoped, tag = 'scoped memory for lookahead.1']
    #allocation5 [shape = 'u8[4096]{0}', space=vmem, size = 0x1000, scoped, tag = 'input window, operand 1, single buffered']
    #allocation6 [shape = 's32[1]{0}', space=sflag, size = 0x4, scoped, tag = 'scoped memory for lookahead.1']
    #allocation7 [shape = 'u8[8192]{0}', space=vmem, size = 0x2000, scoped, tag = 'output window, operand 0, single buffered']
    %8 = vsyncpa [#allocation3], 0
    %9 = vsyncpa [#allocation6], 0
    %10 = vsyncpa [#allocation4], 0
    // Predicated region
    $region2: #{lookahead.1} parent=1 // pred_check
      _
    $region3: #{lookahead.1} parent=1 // pred_check_branch
      %12 = sbr.rel (0) target = $region5
    $region4: #{lookahead.1} parent=1 // pred_region
      %s14 = ssub.s32 256, 256
      %15 = vsyncadd [#allocation3], %s14
      %s16 = sshll.u32 [#allocation2], 4
      %s17 = int_to_ptr.vmem [resolvable:$true] %s16
      %22 = dma.hbm_to_vmem [thread:$0]  %s0, 256, %s17, [#allocation3], 128, 128, 8
    $region5: #{lookahead.1} parent=1 // pred_fallthru
      _
    // Predicated region
    $region6: #{lookahead.1} parent=1 // pred_check
      _
    $region7: #{lookahead.1} parent=1 // pred_check_branch
      %24 = sbr.rel (0) target = $region9
    $region8: #{lookahead.1} parent=1 // pred_region
      %s25 = sadd.s32 0, 1
      %s26 = smul.u32 %s25, 2
      %p27 = scmp.lt.s32.totalorder %s26, 1
      %s28 = scalar_select %p27, %s26, 1
      %s30 = ssub.s32 128, 128
      %31 = vsyncadd [#allocation6], %s30
      %s32 = smul.addr %s28, 128
      %s33 = scalar_lea.hbm %s1, %s32
      %s35 = sshll.u32 [#allocation5], 4
      %s36 = int_to_ptr.vmem [resolvable:$true] %s35
      %38 = dma.hbm_to_vmem [thread:$0]  %s33, 128, %s36, [#allocation6]
    $region9: #{lookahead.1} parent=1 // pred_fallthru
      _
    // Predicated region
    $region10: #{lookahead.1} parent=1 // pred_check
      _
    $region11: #{lookahead.1} parent=1 // pred_check_branch
      %40 = sbr.rel (0) target = $region13
    $region12: #{lookahead.1} parent=1 // pred_region
      _
    $region13: #{lookahead.1} parent=1 // pred_fallthru
      _
    // Predicated region
    $region14: #{lookahead.1} parent=1 // pred_check
      _
    $region15: #{lookahead.1} parent=1 // pred_check_branch
      %42 = sbr.rel (0) target = $region17
    $region16: #{lookahead.1} parent=1 // pred_region
      %43 = dma.done [#allocation3], 256
    $region17: #{lookahead.1} parent=1 // pred_fallthru
      _
    // Predicated region
    $region18: #{lookahead.1} parent=1 // pred_check
      _
    $region19: #{lookahead.1} parent=1 // pred_check_branch
      %45 = sbr.rel (0) target = $region21
    $region20: #{lookahead.1} parent=1 // pred_region
      %46 = dma.done [#allocation6], 128
    $region21: #{lookahead.1} parent=1 // pred_fallthru
      _
    %s47 = sadd.s32 0, 1
    %s48 = smul.u32 %s47, 2
    %p49 = scmp.lt.s32.totalorder %s48, 1
    %s50 = scalar_select %p49, %s48, 1
    %s51 = smul.u32 0, 16
    %s52 = ssub.s32 16, %s51
    %p53 = scmp.ge.s32.totalorder %s52, 24
    %v54 = vld [vmem:[%s2] sm:$0xf]
    // Predicated region
    $region22: #{lookahead.1} parent=1 // pred_check
      %p55 = pneg %p53
    $region23: #{lookahead.1} parent=1 // pred_check_branch
      %57 = sbr.rel (%p55) target = $region25
    $region24: #{lookahead.1} parent=1 // pred_region
      %v58 = vld [vmem:[#allocation2] sm:$0xff]
      %v59 = vld [vmem:[#allocation2 + $0x8] sm:$0xff]
      %v60 = vld [vmem:[#allocation5] sm:$0xff]
      %v61 = vlaneseq
      %v62 = vshrl.u32 %v61, 7
      %v63 = vsub.s32 0, %v62
      %v64 = vrot.slane %v54, %v63
      %v65 = vmul.f32 %v58, %v64
      %v66 = vmul.f32 %v59, %v64
      %v67 = vlaneseq
      %v68 = vshrl.u32 %v67, 7
      %v69 = vsub.s32 1, %v68
      %v70 = vrot.slane %v54, %v69
      %v71 = vmul.f32 %v58, %v70
      %v72 = vmul.f32 %v59, %v70
      %v73 = vmul.f32 %v60, %v70
      %vm77 = vcmask 1045504
      %v78 = vrot.slane %v71, 2
      %v79 = vrot.slane %v72, 2
      %v80 = vsel %vm77, %v78, %v79
      %v81 = vrot.slane %v73, 2
      %v82 = vsel %vm77, %v79, %v81
      %v85 = vadd.f32 %v65, %v80
      %v86 = vadd.f32 %v66, %v82
      %v87 = vlaneseq
      %v88 = vshrl.u32 %v87, 7
      %v89 = vsub.s32 2, %v88
      %v90 = vrot.slane %v54, %v89
      %v91 = vmul.f32 %v58, %v90
      %v92 = vmul.f32 %v59, %v90
      %v93 = vmul.f32 %v60, %v90
      %vm97 = vcmask 1043456
      %v98 = vrot.slane %v91, 4
      %v99 = vrot.slane %v92, 4
      %v100 = vsel %vm97, %v98, %v99
      %v101 = vrot.slane %v93, 4
      %v102 = vsel %vm97, %v99, %v101
      %v105 = vadd.f32 %v85, %v100
      %v106 = vadd.f32 %v86, %v102
      %v107 = vlaneseq
      %v108 = vshrl.u32 %v107, 7
      %v109 = vsub.s32 3, %v108
      %v110 = vrot.slane %v54, %v109
      %v111 = vmul.f32 %v58, %v110
      %v112 = vmul.f32 %v59, %v110
      %v113 = vmul.f32 %v60, %v110
      %vm117 = vcmask 1041408
      %v118 = vrot.slane %v111, 6
      %v119 = vrot.slane %v112, 6
      %v120 = vsel %vm117, %v118, %v119
      %v121 = vrot.slane %v113, 6
      %v122 = vsel %vm117, %v119, %v121
      %v125 = vadd.f32 %v105, %v120
      %v126 = vadd.f32 %v106, %v122
      %vm127 = vcmask 261120
      %128 = vst.msk [vmem:[#allocation7] sm:$0xff] %vm127, %v125
      %129 = vst.msk [vmem:[#allocation7 + $0x8] sm:$0xff] %vm127, %v126
    $region25: #{lookahead.1} parent=1 // pred_fallthru
      _
    %p130 = scmp.lt.s32.totalorder %s52, 24
    // Predicated region
    $region26: #{lookahead.1} parent=1 // pred_check
      %p131 = pneg %p130
    $region27: #{lookahead.1} parent=1 // pred_check_branch
      %133 = sbr.rel (%p131) target = $region29
    $region28: #{lookahead.1} parent=1 // pred_region
      %v134 = vld [vmem:[#allocation2] sm:$0xff]
      %v135 = vld [vmem:[#allocation2 + $0x8] sm:$0xff]
      %v136 = vld [vmem:[#allocation5] sm:$0xff]
      %v137 = vlaneseq
      %v138 = vshrl.u32 %v137, 7
      %v139 = vadd.s32 %v138, 8
      %v140 = vadd.s32 %v138, 16
      %v141 = vstv %s52
      %vm142 = vcmp.lt.s32.totalorder %v138, %v141
      %vm143 = vcmp.lt.s32.totalorder %v139, %v141
      %vm144 = vcmp.lt.s32.totalorder %v140, %v141
      %v145 = vsel %vm142, 1, 0
      %v146 = vsel %vm143, 1, 0
      %v147 = vsel %vm144, 1, 0
      %vm148 = vcmp.eq.s32.totalorder %v145, 1
      %vm149 = vcmp.eq.s32.totalorder %v146, 1
      %vm150 = vcmp.eq.s32.totalorder %v147, 1
      %v151 = vsel %vm148, %v134, 0.0
      %v152 = vsel %vm149, %v135, 0.0
      %v153 = vsel %vm150, %v136, 0.0
      %v154 = vlaneseq
      %v155 = vshrl.u32 %v154, 7
      %v156 = vsub.s32 0, %v155
      %v157 = vrot.slane %v54, %v156
      %v158 = vmul.f32 %v151, %v157
      %v159 = vmul.f32 %v152, %v157
      %v160 = vlaneseq
      %v161 = vshrl.u32 %v160, 7
      %v162 = vsub.s32 1, %v161
      %v163 = vrot.slane %v54, %v162
      %v164 = vmul.f32 %v151, %v163
      %v165 = vmul.f32 %v152, %v163
      %v166 = vmul.f32 %v153, %v163
      %vm170 = vcmask 1045504
      %v171 = vrot.slane %v164, 2
      %v172 = vrot.slane %v165, 2
      %v173 = vsel %vm170, %v171, %v172
      %v174 = vrot.slane %v166, 2
      %v175 = vsel %vm170, %v172, %v174
      %v178 = vadd.f32 %v158, %v173
      %v179 = vadd.f32 %v159, %v175
      %v180 = vlaneseq
      %v181 = vshrl.u32 %v180, 7
      %v182 = vsub.s32 2, %v181
      %v183 = vrot.slane %v54, %v182
      %v184 = vmul.f32 %v151, %v183
      %v185 = vmul.f32 %v152, %v183
      %v186 = vmul.f32 %v153, %v183
      %vm190 = vcmask 1043456
      %v191 = vrot.slane %v184, 4
      %v192 = vrot.slane %v185, 4
      %v193 = vsel %vm190, %v191, %v192
      %v194 = vrot.slane %v186, 4
      %v195 = vsel %vm190, %v192, %v194
      %v198 = vadd.f32 %v178, %v193
      %v199 = vadd.f32 %v179, %v195
      %v200 = vlaneseq
      %v201 = vshrl.u32 %v200, 7
      %v202 = vsub.s32 3, %v201
      %v203 = vrot.slane %v54, %v202
      %v204 = vmul.f32 %v151, %v203
      %v205 = vmul.f32 %v152, %v203
      %v206 = vmul.f32 %v153, %v203
      %vm210 = vcmask 1041408
      %v211 = vrot.slane %v204, 6
      %v212 = vrot.slane %v205, 6
      %v213 = vsel %vm210, %v211, %v212
      %v214 = vrot.slane %v206, 6
      %v215 = vsel %vm210, %v212, %v214
      %v218 = vadd.f32 %v198, %v213
      %v219 = vadd.f32 %v199, %v215
      %vm220 = vcmask 261120
      %221 = vst.msk [vmem:[#allocation7] sm:$0xff] %vm220, %v218
      %222 = vst.msk [vmem:[#allocation7 + $0x8] sm:$0xff] %vm220, %v219
    $region29: #{lookahead.1} parent=1 // pred_fallthru
      _
    // Predicated region
    $region30: #{lookahead.1} parent=1 // pred_check
      _
    $region31: #{lookahead.1} parent=1 // pred_check_branch
      %224 = sbr.rel (0) target = $region33
    $region32: #{lookahead.1} parent=1 // pred_region
      %s226 = ssub.s32 256, 256
      %227 = vsyncadd [#allocation4], %s226
      %s228 = sshll.u32 [#allocation7], 4
      %s229 = int_to_ptr.vmem [resolvable:$true] %s228
      %234 = dma.vmem_to_hbm [thread:$0]  %s229, 256, %s3, [#allocation4], 128, 128, 8
    $region33: #{lookahead.1} parent=1 // pred_fallthru
      _
    // Predicated region
    $region34: #{lookahead.1} parent=1 // pred_check
      _
    $region35: #{lookahead.1} parent=1 // pred_check_branch
      %236 = sbr.rel (0) target = $region37
    $region36: #{lookahead.1} parent=1 // pred_region
      %237 = dma.done [#allocation4], 256
    $region37: #{lookahead.1} parent=1 // pred_fallthru
      _
    %238 = vsyncpa [#allocation3], 1
    %239 = vsyncpa [#allocation6], 1
    %240 = vsyncpa [#allocation4], 1

</llo_original>
